<compile_context>
chip_gen: v7x
topology: tpu7x:2x2x1
jax: 0.10.0
libtpu: 0.0.40
codegen_flags: <defaults>
</compile_context>

<pallas_src>
import functools

import jax
import jax.numpy as jnp
from jax.experimental import pallas as pl
from jax.experimental.pallas import tpu as pltpu

LANE = 128
SUBLANE = 8
# 8192 rows x 128 lanes x 4 B = 4 MiB per input block; 2 inputs x 2 pipeline
# buffers = 16 MiB of streamed VMEM.
MAX_BLOCK_ROWS = 8192
# Raise the scoped-VMEM limit explicitly so the 8192-row tile also works on
# v5e (16 MiB default scoped limit) while staying well under v7x's 64 MiB
# physical VMEM per TensorCore.
VMEM_LIMIT_BYTES = 40 * 1024 * 1024
# Leading "parallel" grid axis sharded across TensorCores on v7x.
NUM_CORES = 2


def _cdiv(a, b):
    return (a + b - 1) // b


def _round_up(x, m):
    return ((x + m - 1) // m) * m


def _iou_sums_kernel(x_ref, t_ref, out_ref, *, rows, block_rows,
                     blocks_per_core, need_mask):
    """Accumulates vreg-shaped partial sums of x*t and x+t into out_ref.

    out_ref is this core's (2, 8, 128) resident accumulator slab (constant
    block index across the inner grid axis): slot 0 accumulates intersection
    partials, slot 1 accumulates the (x + t) partials.
    """
    i = pl.program_id(1)

    @pl.when(i == 0)
    def _():
        out_ref[...] = jnp.zeros_like(out_ref)

    x = x_ref[...].astype(jnp.float32)
    t = t_ref[...].astype(jnp.float32)

    def accumulate(xv, tv):
        prod = xv * tv
        ssum = xv + tv
        # (R, 128) -> (R/8, 8, 128) is tile-aligned (each (8, 128) slab is one
        # native tile), so the leading-axis sum is plain vreg-wise VPU adds.
        # The expensive cross-lane reduce happens once, on the tiny
        # (2*cores, 8, 128) output, outside the kernel.
        out_ref[0] += jnp.sum(prod.reshape(-1, SUBLANE, LANE), axis=0)
        out_ref[1] += jnp.sum(ssum.reshape(-1, SUBLANE, LANE), axis=0)

    if need_mask:
        # Masked path only for the final ragged block and for any overflow
        # step whose input index was clamped onto the last block (the overflow
        # step then contributes exactly zero).  All other blocks take the
        # unmasked hot path, so the iota/compare/select cost never touches the
        # steady state.
        c = pl.program_id(0)
        row_start = (c * blocks_per_core + i) * block_rows
        is_ragged = row_start + block_rows > rows

        @pl.when(is_ragged)
        def _():
            row_ids = row_start + jax.lax.broadcasted_iota(
                jnp.int32, x.shape, 0)
            valid = row_ids < rows
            accumulate(jnp.where(valid, x, 0.0), jnp.where(valid, t, 0.0))

        @pl.when(jnp.logical_not(is_ragged))
        def _():
            accumulate(x, t)
    else:
        accumulate(x, t)


def iou_loss(inputs, targets, smooth=1.0):
    """Pallas TPU implementation of IoULoss.forward (returns a scalar)."""
    x = inputs.reshape(-1)
    t = targets.reshape(-1)
    n = x.shape[0]

    if n % LANE != 0:
        # TODO(synk): a non-multiple-of-128 element count takes one extra pad
        # copy; element-granular masking of the last row would avoid it, but
        # typical segmentation shapes never hit this branch.
        pad = (-n) % LANE
        x = jnp.pad(x, (0, pad))
        t = jnp.pad(t, (0, pad))

    rows = x.shape[0] // LANE
    x = x.reshape(rows, LANE)   # contiguous metadata reshape (free)
    t = t.reshape(rows, LANE)

    # block_rows is always a multiple of 8 so the in-kernel (R,128)->(R/8,8,128)
    # reshape stays tile-aligned; ragged last blocks are masked in-kernel.
    block_rows = min(MAX_BLOCK_ROWS, _round_up(rows, SUBLANE))
    num_blocks = _cdiv(rows, block_rows)
    num_cores = NUM_CORES if num_blocks >= NUM_CORES else 1
    blocks_per_core = _cdiv(num_blocks, num_cores)
    # Mask needed iff the last block is ragged or the core split leaves an
    # overflow step (whose input index is clamped onto the last block).
    need_mask = (rows % block_rows != 0) or (
        num_cores * blocks_per_core != num_blocks)

    def in_index_map(c, i):
        blk = c * blocks_per_core + i
        # Clamp overflow steps onto the last real block; the kernel masks
        # their contribution to zero.
        return (jnp.minimum(blk, num_blocks - 1), 0)

    kernel = functools.partial(
        _iou_sums_kernel,
        rows=rows,
        block_rows=block_rows,
        blocks_per_core=blocks_per_core,
        need_mask=need_mask,
    )

    in_bytes = 2 * rows * LANE * jnp.dtype(x.dtype).itemsize
    out_bytes = num_cores * 2 * SUBLANE * LANE * 4

    partial_sums = pl.pallas_call(
        kernel,
        out_shape=jax.ShapeDtypeStruct((2 * num_cores, SUBLANE, LANE),
                                       jnp.float32),
        grid_spec=pltpu.PrefetchScalarGridSpec(
            num_scalar_prefetch=0,
            grid=(num_cores, blocks_per_core),
            in_specs=[
                pl.BlockSpec((block_rows, LANE), in_index_map),
                pl.BlockSpec((block_rows, LANE), in_index_map),
            ],
            # Per-core resident accumulator: the output block index depends
            # only on the parallel core axis, so each core owns its own
            # (2, 8, 128) slab and there is no cross-core race.
            out_specs=pl.BlockSpec((2, SUBLANE, LANE), lambda c, i: (c, 0, 0)),
        ),
        compiler_params=pltpu.CompilerParams(
            dimension_semantics=("parallel", "arbitrary"),
            vmem_limit_bytes=VMEM_LIMIT_BYTES,
        ),
        cost_estimate=pl.CostEstimate(
            flops=4 * rows * LANE,
            transcendentals=0,
            bytes_accessed=in_bytes + out_bytes,
        ),
    )(x, t)

    # Tiny (2*cores, 8, 128) reduction + smooth/IoU arithmetic in the wrapper,
    # so `smooth` never needs to be captured inside the kernel.
    intersection = jnp.sum(partial_sums[0::2])
    total = jnp.sum(partial_sums[1::2])
    union = total - intersection
    smooth = jnp.float32(smooth)
    iou = (intersection + smooth) / (union + smooth)
    return jnp.float32(1.0) - iou


def iou_loss_ref(inputs, targets, smooth=1.0):
    x = inputs.reshape(-1).astype(jnp.float32)
    t = targets.reshape(-1).astype(jnp.float32)
    intersection = jnp.sum(x * t)
    total = jnp.sum(x + t)
    union = total - intersection
    return 1.0 - (intersection + smooth) / (union + smooth)


if __name__ == "__main__":
    key = jax.random.PRNGKey(0)
    k1, k2 = jax.random.split(key)
    # Small shapes consistent with a segmentation-style usage: (B, C, H, W).
    inputs = jax.nn.sigmoid(jax.random.normal(k1, (2, 4, 16, 16), jnp.float32))
    targets = (jax.random.uniform(k2, (2, 4, 16, 16)) > 0.5).astype(jnp.float32)

    loss = jax.block_until_ready(iou_loss(inputs, targets, smooth=1.0))
    ref = jax.block_until_ready(iou_loss_ref(inputs, targets, smooth=1.0))

    assert jnp.allclose(loss, ref, rtol=1e-5, atol=1e-5), (loss, ref)
    print("KERNEL_OK")
</pallas_src>

<mosaic_0001>
module attributes {stable_mosaic.version = 11 : i64} {
  func.func @_iou_sums_kernel(%arg0: i32, %arg1: i32, %arg2: memref<16x128xf32, #tpu.memory_space<vmem>>, %arg3: memref<16x128xf32, #tpu.memory_space<vmem>>, %arg4: memref<2x8x128xf32, #tpu.memory_space<vmem>>) attributes {dimension_semantics = [#tpu.dimension_semantics<parallel>, #tpu.dimension_semantics<arbitrary>], iteration_bounds = array<i64: 1, 1>, scalar_prefetch = 0 : i64, scratch_operands = 0 : i64, tpu.core_type = #tpu.core_type<tc>, window_params = [{transform_indices = @transform_0, window_bounds = array<i64: 16, 128>}, {transform_indices = @transform_1, window_bounds = array<i64: 16, 128>}, {transform_indices = @transform_2, window_bounds = array<i64: 2, 8, 128>}]} {
    %c0_i32 = arith.constant 0 : i32
    %0 = arith.cmpi eq, %arg1, %c0_i32 : i32
    %1 = arith.extui %0 : i1 to i32
    %c0_i32_0 = arith.constant 0 : i32
    %2 = arith.cmpi ne, %1, %c0_i32_0 : i32
    scf.if %2 {
      %cst_16 = arith.constant 0.000000e+00 : f32
      %23 = vector.broadcast %cst_16 : f32 to vector<2x8x128xf32>
      %c0_17 = arith.constant 0 : index
      %c0_18 = arith.constant 0 : index
      %c0_19 = arith.constant 0 : index
      %24 = vector.load %arg4[%c0_17, %c0_18, %c0_19] : memref<2x8x128xf32, #tpu.memory_space<vmem>>, vector<2x8x128xf32>
      tpu.vector_store %arg4[%c0_17, %c0_18, %c0_19], %23 {strides = array<i32>} : memref<2x8x128xf32, #tpu.memory_space<vmem>>, vector<2x8x128xf32>,
    } else {
    }
    %c0 = arith.constant 0 : index
    %c0_1 = arith.constant 0 : index
    %3 = vector.load %arg2[%c0, %c0_1] : memref<16x128xf32, #tpu.memory_space<vmem>>, vector<16x128xf32>
    %c0_2 = arith.constant 0 : index
    %c0_3 = arith.constant 0 : index
    %4 = vector.load %arg3[%c0_2, %c0_3] : memref<16x128xf32, #tpu.memory_space<vmem>>, vector<16x128xf32>
    %5 = arith.mulf %3, %4 : vector<16x128xf32>
    %6 = arith.addf %3, %4 : vector<16x128xf32>
    %c0_4 = arith.constant 0 : index
    %c0_5 = arith.constant 0 : index
    %c0_6 = arith.constant 0 : index
    %7 = vector.load %arg4[%c0_4, %c0_5, %c0_6] : memref<2x8x128xf32, #tpu.memory_space<vmem>>, vector<1x8x128xf32>
    %8 = vector.shape_cast %7 : vector<1x8x128xf32> to vector<8x128xf32>
    %9 = vector.shape_cast %5 : vector<16x128xf32> to vector<2x8x128xf32>
    %cst = arith.constant dense<0.000000e+00> : vector<8x128xf32>
    %10 = vector.multi_reduction <add>, %9, %cst [0] : vector<2x8x128xf32> to vector<8x128xf32>
    %11 = arith.addf %8, %10 : vector<8x128xf32>
    %c0_7 = arith.constant 0 : index
    %c0_8 = arith.constant 0 : index
    %c0_9 = arith.constant 0 : index
    %12 = vector.load %arg4[%c0_7, %c0_8, %c0_9] : memref<2x8x128xf32, #tpu.memory_space<vmem>>, vector<1x8x128xf32>
    %13 = vector.shape_cast %12 : vector<1x8x128xf32> to vector<8x128xf32>
    %14 = vector.shape_cast %11 : vector<8x128xf32> to vector<1x8x128xf32>
    tpu.vector_store %arg4[%c0_7, %c0_8, %c0_9], %14 {strides = array<i32>} : memref<2x8x128xf32, #tpu.memory_space<vmem>>, vector<1x8x128xf32>,
    %c1 = arith.constant 1 : index
    %c0_10 = arith.constant 0 : index
    %c0_11 = arith.constant 0 : index
    %15 = vector.load %arg4[%c1, %c0_10, %c0_11] : memref<2x8x128xf32, #tpu.memory_space<vmem>>, vector<1x8x128xf32>
    %16 = vector.shape_cast %15 : vector<1x8x128xf32> to vector<8x128xf32>
    %17 = vector.shape_cast %6 : vector<16x128xf32> to vector<2x8x128xf32>
    %cst_12 = arith.constant dense<0.000000e+00> : vector<8x128xf32>
    %18 = vector.multi_reduction <add>, %17, %cst_12 [0] : vector<2x8x128xf32> to vector<8x128xf32>
    %19 = arith.addf %16, %18 : vector<8x128xf32>
    %c1_13 = arith.constant 1 : index
    %c0_14 = arith.constant 0 : index
    %c0_15 = arith.constant 0 : index
    %20 = vector.load %arg4[%c1_13, %c0_14, %c0_15] : memref<2x8x128xf32, #tpu.memory_space<vmem>>, vector<1x8x128xf32>
    %21 = vector.shape_cast %20 : vector<1x8x128xf32> to vector<8x128xf32>
    %22 = vector.shape_cast %19 : vector<8x128xf32> to vector<1x8x128xf32>
    tpu.vector_store %arg4[%c1_13, %c0_14, %c0_15], %22 {strides = array<i32>} : memref<2x8x128xf32, #tpu.memory_space<vmem>>, vector<1x8x128xf32>,
    return
  }
  func.func @transform_0(%arg0: i32, %arg1: i32) -> (i32, i32) {
    %c1_i32 = arith.constant 1 : i32
    %0 = arith.muli %arg0, %c1_i32 : i32
    %1 = arith.addi %0, %arg1 : i32
    %c0_i32 = arith.constant 0 : i32
    %2 = arith.minsi %1, %c0_i32 : i32
    %c0_i32_0 = arith.constant 0 : i32
    %c0_i32_1 = arith.constant 0 : i32
    return %2, %c0_i32_0 : i32, i32
  }
  func.func @transform_1(%arg0: i32, %arg1: i32) -> (i32, i32) {
    %c1_i32 = arith.constant 1 : i32
    %0 = arith.muli %arg0, %c1_i32 : i32
    %1 = arith.addi %0, %arg1 : i32
    %c0_i32 = arith.constant 0 : i32
    %2 = arith.minsi %1, %c0_i32 : i32
    %c0_i32_0 = arith.constant 0 : i32
    %c0_i32_1 = arith.constant 0 : i32
    return %2, %c0_i32_0 : i32, i32
  }
  func.func @transform_2(%arg0: i32, %arg1: i32) -> (i32, i32, i32) {
    %c0_i32 = arith.constant 0 : i32
    %c0_i32_0 = arith.constant 0 : i32
    %c0_i32_1 = arith.constant 0 : i32
    return %arg0, %c0_i32, %c0_i32_0 : i32, i32, i32
  }
}

</mosaic_0001>

<llo_original>
// kernel: tpu_custom_call.1
$region0: #{tpu_custom_call.1}
  #allocation0 [shape = 'u32[]', space=smem, size = 0x4, offset = 0x4, fixed_abs, tag = 'smem constant byte address 0x4 - core index']
  #allocation1 [shape = 'u32[144,128]{1,0:T(1,128)}', space=vmem, size = 0x12000, scoped, tag = 'internal scratch']
  %s0 = inlined_call_operand.hbm [shape: f32[16,128], index: 0, kind: input, shape index: {}]
  %s1 = inlined_call_operand.hbm [shape: f32[16,128], index: 1, kind: input, shape index: {}]
  %s2 = inlined_call_operand.hbm [shape: f32[2,8,128], index: 2, kind: output, shape index: {}]
  %s3 = sld [smem:[#allocation0]]
  $region30: #{tpu_custom_call.1} parent=0
    _
  %s5 = ssub.s32 1, %s3
  %s6 = scalar_select 0, %s5, %s3
  $region1: #{tpu_custom_call.1} parent=0
    #allocation2 [shape = 'u8[8192]{0}', space=vmem, size = 0x2000, scoped, tag = 'input window, operand 0, single buffered']
    #allocation3 [shape = 's32[1]{0}', space=sflag, size = 0x4, scoped, tag = 'scoped memory for tpu_custom_call.1']
    #allocation4 [shape = 's32[1]{0}', space=sflag, size = 0x4, scoped, tag = 'scoped memory for tpu_custom_call.1']
    #allocation5 [shape = 'u8[8192]{0}', space=vmem, size = 0x2000, scoped, tag = 'input window, operand 1, single buffered']
    #allocation6 [shape = 's32[1]{0}', space=sflag, size = 0x4, scoped, tag = 'scoped memory for tpu_custom_call.1']
    #allocation7 [shape = 'u8[8192]{0}', space=vmem, size = 0x2000, scoped, tag = 'output window, operand 0, single buffered']
    %7 = vsyncpa [#allocation3], 0
    %8 = vsyncpa [#allocation6], 0
    %9 = vsyncpa [#allocation4], 0
    // Predicated region
    $region2: #{tpu_custom_call.1} parent=1 // pred_check
      _
    $region3: #{tpu_custom_call.1} parent=1 // pred_check_branch
      %11 = sbr.rel (0) target = $region5
    $region4: #{tpu_custom_call.1} parent=1 // pred_region
      %s12 = sadd.s32 0, 0
      %p13 = scmp.lt.s32.totalorder %s12, 0
      %s14 = scalar_select %p13, %s12, 0
      %s15 = smul.u32 2, %s14
      %s17 = ssub.s32 256, 256
      %18 = vsyncadd [#allocation3], %s17
      %s19 = smul.addr %s15, 128
      %s20 = scalar_lea.hbm %s0, %s19
      %s21 = sshll.u32 [#allocation2], 4
      %s22 = int_to_ptr.vmem [resolvable:$true] %s21
      %27 = dma.hbm_to_vmem [thread:$0]  %s20, 256, %s22, [#allocation3], 128, 128, 8
    $region5: #{tpu_custom_call.1} parent=1 // pred_fallthru
      _
    // Predicated region
    $region6: #{tpu_custom_call.1} parent=1 // pred_check
      _
    $region7: #{tpu_custom_call.1} parent=1 // pred_check_branch
      %29 = sbr.rel (0) target = $region9
    $region8: #{tpu_custom_call.1} parent=1 // pred_region
      %s30 = sadd.s32 0, 0
      %p31 = scmp.lt.s32.totalorder %s30, 0
      %s32 = scalar_select %p31, %s30, 0
      %s33 = smul.u32 2, %s32
      %s35 = ssub.s32 256, 256
      %36 = vsyncadd [#allocation6], %s35
      %s37 = smul.addr %s33, 128
      %s38 = scalar_lea.hbm %s1, %s37
      %s39 = sshll.u32 [#allocation5], 4
      %s40 = int_to_ptr.vmem [resolvable:$true] %s39
      %45 = dma.hbm_to_vmem [thread:$0]  %s38, 256, %s40, [#allocation6], 128, 128, 8
    $region9: #{tpu_custom_call.1} parent=1 // pred_fallthru
      _
    // Predicated region
    $region10: #{tpu_custom_call.1} parent=1 // pred_check
      _
    $region11: #{tpu_custom_call.1} parent=1 // pred_check_branch
      %47 = sbr.rel (0) target = $region13
    $region12: #{tpu_custom_call.1} parent=1 // pred_region
      %48 = dma.done [#allocation3], 256
    $region13: #{tpu_custom_call.1} parent=1 // pred_fallthru
      _
    // Predicated region
    $region14: #{tpu_custom_call.1} parent=1 // pred_check
      _
    $region15: #{tpu_custom_call.1} parent=1 // pred_check_branch
      %50 = sbr.rel (0) target = $region17
    $region16: #{tpu_custom_call.1} parent=1 // pred_region
      %51 = dma.done [#allocation6], 256
    $region17: #{tpu_custom_call.1} parent=1 // pred_fallthru
      _
    %s52 = sadd.s32 0, 0
    %p53 = scmp.lt.s32.totalorder %s52, 0
    %s54 = scalar_select %p53, %s52, 0
    %s55 = smul.u32 2, %s54
    %s56 = sadd.s32 0, 0
    %p57 = scmp.lt.s32.totalorder %s56, 0
    %s58 = scalar_select %p57, %s56, 0
    %s59 = smul.u32 2, %s58
    %p60 = scmp.eq.s32.totalorder 0, 0
    // Predicated region
    $region18: #{tpu_custom_call.1} parent=1 // pred_check
      %p61 = pneg %p60
    $region19: #{tpu_custom_call.1} parent=1 // pred_check_branch
      %63 = sbr.rel (%p61) target = $region21
    $region20: #{tpu_custom_call.1} parent=1 // pred_region
      %64 = vst [vmem:[#allocation7] sm:$0xff] 0.0
      %65 = vst [vmem:[#allocation7 + $0x8] sm:$0xff] 0.0
    $region21: #{tpu_custom_call.1} parent=1 // pred_fallthru
      _
    %v66 = vld [vmem:[#allocation2] sm:$0xff]
    %v67 = vld [vmem:[#allocation2 + $0x8] sm:$0xff]
    %v68 = vld [vmem:[#allocation5] sm:$0xff]
    %v69 = vld [vmem:[#allocation5 + $0x8] sm:$0xff]
    %v70 = vmul.f32 %v66, %v68
    %v71 = vmul.f32 %v67, %v69
    %v72 = vadd.f32 %v66, %v68
    %v73 = vadd.f32 %v67, %v69
    %v74 = vld [vmem:[#allocation7] sm:$0xff]
    %v75 = vadd.f32 %v70, %v71
    %v76 = vadd.f32 %v74, %v75
    %77 = vst [vmem:[#allocation7] sm:$0xff] %v76
    %s78 = scalar_lea.vmem [#allocation7], 8
    %v79 = vld [vmem:[%s78] sm:$0xff]
    %v80 = vadd.f32 %v72, %v73
    %v81 = vadd.f32 %v79, %v80
    %82 = vst [vmem:[%s78] sm:$0xff] %v81
    // Predicated region
    $region22: #{tpu_custom_call.1} parent=1 // pred_check
      _
    $region23: #{tpu_custom_call.1} parent=1 // pred_check_branch
      %84 = sbr.rel (0) target = $region25
    $region24: #{tpu_custom_call.1} parent=1 // pred_region
      %s86 = ssub.s32 256, 256
      %87 = vsyncadd [#allocation4], %s86
      %s88 = sshll.u32 [#allocation7], 4
      %s89 = int_to_ptr.vmem [resolvable:$true] %s88
      %94 = dma.vmem_to_hbm [thread:$0]  %s89, 256, %s2, [#allocation4], 128, 128, 8
    $region25: #{tpu_custom_call.1} parent=1 // pred_fallthru
      _
    // Predicated region
    $region26: #{tpu_custom_call.1} parent=1 // pred_check
      _
    $region27: #{tpu_custom_call.1} parent=1 // pred_check_branch
      %96 = sbr.rel (0) target = $region29
    $region28: #{tpu_custom_call.1} parent=1 // pred_region
      %97 = dma.done [#allocation4], 256
    $region29: #{tpu_custom_call.1} parent=1 // pred_fallthru
      _
    %98 = vsyncpa [#allocation3], 1
    %99 = vsyncpa [#allocation6], 1
    %100 = vsyncpa [#allocation4], 1

</llo_original>
